<compile_context>
chip_gen: v6e
topology: v6e:2x2x1
jax: 0.10.0
libtpu: 0.0.40
codegen_flags: <defaults>
</compile_context>

<pallas_src>
import jax
import jax.numpy as jnp
from jax.experimental import pallas as pl
from jax.experimental.pallas import tpu as pltpu

# Arrays smaller than this are copied with one DMA; larger ones are split into
# up to _MAX_DMA_CHUNKS concurrent DMAs along the leading axis.
_CHUNK_THRESHOLD_BYTES = 4 * 1024 * 1024
_MAX_DMA_CHUNKS = 4


def _make_dma_copy_kernel(chunk_starts, chunk_sizes):
    """Build a kernel that copies x -> o via direct HBM->HBM DMAs.

    chunk_starts/chunk_sizes are static Python ints describing a partition of
    the leading axis. One DMA (and one semaphore) per chunk; all chunks are
    started before any wait so they overlap on the DMA engines.
    """
    num_chunks = len(chunk_starts)

    def kernel(x_hbm_ref, o_hbm_ref, sems):
        copies = []
        for c in range(num_chunks):
            s = chunk_starts[c]
            sz = chunk_sizes[c]
            cp = pltpu.make_async_copy(
                x_hbm_ref.at[pl.ds(s, sz)],
                o_hbm_ref.at[pl.ds(s, sz)],
                sems.at[c],
            )
            cp.start()
            copies.append(cp)
        for cp in copies:
            cp.wait()

    return kernel, num_chunks


def _chunk_leading_axis(leading: int, total_bytes: int):
    """Partition the leading axis into 1..4 contiguous static chunks."""
    if total_bytes < _CHUNK_THRESHOLD_BYTES or leading < 2:
        return [0], [leading]
    n = min(_MAX_DMA_CHUNKS, leading)
    base = leading // n
    rem = leading % n
    starts, sizes = [], []
    off = 0
    for c in range(n):
        sz = base + (1 if c < rem else 0)
        starts.append(off)
        sizes.append(sz)
        off += sz
    return starts, sizes


def pallas_identity(x: jax.Array) -> jax.Array:
    """Identity of x routed through a pallas_call (direct HBM->HBM DMA copy).

    Only needed when a framework forces a pallas_call boundary; otherwise use
    the zero-cost pass-through in identity_forward().
    """
    if x.size == 0:
        return x

    orig_shape = x.shape
    squeeze_back = False
    if x.ndim == 0:
        # Give the DMA a 1-D view; reshaped back below.
        x = x.reshape((1,))
        squeeze_back = True

    total_bytes = x.size * jnp.dtype(x.dtype).itemsize
    chunk_starts, chunk_sizes = _chunk_leading_axis(x.shape[0], total_bytes)
    kernel, num_chunks = _make_dma_copy_kernel(chunk_starts, chunk_sizes)

    out = pl.pallas_call(
        kernel,
        out_shape=jax.ShapeDtypeStruct(x.shape, x.dtype),
        in_specs=[pl.BlockSpec(memory_space=pl.ANY)],   # raw HBM ref, no auto-DMA
        out_specs=pl.BlockSpec(memory_space=pl.ANY),    # raw HBM ref, no auto-DMA
        scratch_shapes=[pltpu.SemaphoreType.DMA((num_chunks,))],
    )(x)

    if squeeze_back:
        out = out.reshape(orig_shape)
    return out


# ---- Module interfaces (match the PyTorch Identity module) ------------------

def identity_forward(x: jax.Array, length: jax.Array, *,
                     force_pallas_boundary: bool = False):
    """Training graph interface: forward(x, length) -> (x, length).

    Default is the true identity (no copy, no kernel). Set
    force_pallas_boundary=True only if a pallas_call boundary is required.
    """
    if force_pallas_boundary:
        return pallas_identity(x), length
    return x, length


def identity_non_streaming_inference(x: jax.Array, *,
                                     force_pallas_boundary: bool = False):
    """Inference graph interface, non-streaming."""
    return pallas_identity(x) if force_pallas_boundary else x


def identity_simu_streaming_inference(x: jax.Array, config=None):
    """Inference graph interface, simulated streaming (config API-only)."""
    return x


def identity_streaming_forward(x: jax.Array, length: jax.Array, dummy: int = -1):
    """Streaming forward interface."""
    return x, length


if __name__ == "__main__":
    key = jax.random.PRNGKey(0)
    kx, kl = jax.random.split(key)

    B, T, D = 2, 8, 32  # small shapes: batch=2, seq=8, hidden=32
    x = jax.random.normal(kx, (B, T, D), dtype=jnp.float32)
    length = jax.random.randint(kl, (B,), minval=1, maxval=T + 1, dtype=jnp.int32)

    # Host snapshots so assertions are independent of any device aliasing.
    x_host = jax.device_get(x)
    length_host = jax.device_get(length)

    # 1) Primary (zero-cost) path: pure pass-through, no kernel at all.
    y0, len0 = identity_forward(x, length)
    assert y0 is x and len0 is length

    # 2) Forced pallas_call boundary: direct HBM->HBM DMA copy.
    y1, len1 = identity_forward(x, length, force_pallas_boundary=True)
    y1 = jax.block_until_ready(y1)
    assert y1.shape == x.shape and y1.dtype == x.dtype
    assert jnp.array_equal(y1, x_host)
    assert jnp.array_equal(len1, length_host)

    # 3) Shape whose element count is not a multiple of 128: the DMA path has
    #    no (8,128) tiling constraint, so it handles this directly.
    x_odd = jax.random.normal(kx, (2, 5, 7), dtype=jnp.float32)
    x_odd_host = jax.device_get(x_odd)
    y2 = jax.block_until_ready(pallas_identity(x_odd))
    assert y2.shape == x_odd.shape
    assert jnp.array_equal(y2, x_odd_host)

    # 4) bf16 input through the forced-boundary path (bit-exact copy).
    x_bf16 = x.astype(jnp.bfloat16)
    y3 = jax.block_until_ready(pallas_identity(x_bf16))
    assert jnp.array_equal(y3, jax.device_get(x_bf16))

    # 5) Inference / streaming interfaces (pass-through).
    z = identity_non_streaming_inference(x)
    zz = identity_simu_streaming_inference(x)
    zs, len_s = identity_streaming_forward(x, length)
    assert z is x and zz is x and zs is x and len_s is length

    print("KERNEL_OK")
</pallas_src>

<mosaic_0001>
module attributes {stable_mosaic.version = 11 : i64} {
  func.func @kernel(%arg0: memref<2x8x32xf32, #tpu.memory_space<any>>, %arg1: memref<2x8x32xf32, #tpu.memory_space<any>>, %arg2: memref<1x!tpu.dma_semaphore, #tpu.memory_space<semaphore_mem>>) attributes {dimension_semantics = [], scalar_prefetch = 0 : i64, scratch_operands = 1 : i64, tpu.core_type = #tpu.core_type<tc>} {
    %c0_i32 = arith.constant 0 : i32
    %c0_i32_0 = arith.constant 0 : i32
    %c0_i32_1 = arith.constant 0 : i32
    %c0_i32_2 = arith.constant 0 : i32
    %0 = tpu.memref_slice %arg0[%c0_i32_0, %c0_i32_1, %c0_i32_2] : memref<2x8x32xf32, #tpu.memory_space<any>> -> memref<2x8x32xf32, #tpu.memory_space<any>>
    %c0_i32_3 = arith.constant 0 : i32
    %c0_i32_4 = arith.constant 0 : i32
    %c0_i32_5 = arith.constant 0 : i32
    %1 = tpu.memref_slice %arg1[%c0_i32_3, %c0_i32_4, %c0_i32_5] : memref<2x8x32xf32, #tpu.memory_space<any>> -> memref<2x8x32xf32, #tpu.memory_space<any>>
    %2 = tpu.memref_slice %arg2[%c0_i32] : memref<1x!tpu.dma_semaphore, #tpu.memory_space<semaphore_mem>> -> memref<1x!tpu.dma_semaphore, #tpu.memory_space<semaphore_mem>>
    %3 = tpu.memref_squeeze %2 : memref<1x!tpu.dma_semaphore, #tpu.memory_space<semaphore_mem>> -> memref<!tpu.dma_semaphore, #tpu.memory_space<semaphore_mem>>
    tpu.enqueue_dma source(%0 : memref<2x8x32xf32, #tpu.memory_space<any>>) target(%1 : memref<2x8x32xf32, #tpu.memory_space<any>>) target_semaphore(%3 : memref<!tpu.dma_semaphore, #tpu.memory_space<semaphore_mem>>)
    %c0_i32_6 = arith.constant 0 : i32
    %c0_i32_7 = arith.constant 0 : i32
    %c0_i32_8 = arith.constant 0 : i32
    %c0_i32_9 = arith.constant 0 : i32
    %4 = tpu.memref_slice %arg0[%c0_i32_7, %c0_i32_8, %c0_i32_9] : memref<2x8x32xf32, #tpu.memory_space<any>> -> memref<2x8x32xf32, #tpu.memory_space<any>>
    %c0_i32_10 = arith.constant 0 : i32
    %c0_i32_11 = arith.constant 0 : i32
    %c0_i32_12 = arith.constant 0 : i32
    %5 = tpu.memref_slice %arg1[%c0_i32_10, %c0_i32_11, %c0_i32_12] : memref<2x8x32xf32, #tpu.memory_space<any>> -> memref<2x8x32xf32, #tpu.memory_space<any>>
    %6 = tpu.memref_slice %arg2[%c0_i32_6] : memref<1x!tpu.dma_semaphore, #tpu.memory_space<semaphore_mem>> -> memref<1x!tpu.dma_semaphore, #tpu.memory_space<semaphore_mem>>
    %7 = tpu.memref_squeeze %6 : memref<1x!tpu.dma_semaphore, #tpu.memory_space<semaphore_mem>> -> memref<!tpu.dma_semaphore, #tpu.memory_space<semaphore_mem>>
    tpu.wait_dma2 semaphore(%7 : memref<!tpu.dma_semaphore, #tpu.memory_space<semaphore_mem>>) src(%4 : memref<2x8x32xf32, #tpu.memory_space<any>>) dst(%5 : memref<2x8x32xf32, #tpu.memory_space<any>>)
    return
  }
}

</mosaic_0001>

<llo_original>
// kernel: tpu_custom_call.1
$region0: #{tpu_custom_call.1}
  #allocation0 [shape = 'u32[]', space=smem, size = 0x4, offset = 0x4, fixed_abs, tag = 'smem constant byte address 0x4 - core index']
  #allocation1 [shape = 'u32[144,128]{1,0:T(1,128)}', space=vmem, size = 0x12000, scoped, tag = 'internal scratch']
  #allocation2 [shape = 's32[1]{0}', space=sflag, size = 0x4, scoped, tag = 'scratch operand']
  #allocation3 [shape = 's32[]', space=sflag, size = 0x4, offset = 0, fixed_abs, tag = 'sflag constant byte address 0x0 - dummy sync flag']
  #allocation4 [shape = 'u32[0]{0}', space=smem, size = 0, offset = 0, fixed_abs, tag = 'smem constant byte address 0x0 - null']
  %s0 = inlined_call_operand.hbm [shape: f32[2,8,32], index: 0, kind: input, shape index: {}]
  %s1 = inlined_call_operand.hbm [shape: f32[2,8,32], index: 1, kind: output, shape index: {}]
  %s2 = sld [smem:[#allocation0]]
  $region2: #{tpu_custom_call.1} parent=0
    _
  %s4 = ssub.s32 1, %s2
  %s5 = scalar_select 0, %s4, %s2
  %s7 = sshll.u32 1, 14
  %s8 = sxor.u32 4294967295, %s7
  %12 = dma.general %s0, 256, %s1, [#allocation2], 131072, [#allocation4], 0, 0
  %s13 = smul.u32 2, 8
  %s14 = smul.u32 %s13, 1
  %s15 = sshll.u32 %s14, 4
  %16 = dma.done [#allocation2], %s15
  %17 = vsyncmov [#allocation2]
  %s18 = vpop.sfrf %17
  %p19 = scmp.eq.s32.totalorder %s18, 0
  %p20 = pneg %p19
  %22 = shalt.err (%p20)

</llo_original>
